<compile_context>
chip_gen: v6e
topology: v6e:2x2x1
jax: 0.10.0
libtpu: 0.0.40
codegen_flags: <defaults>
</compile_context>

<pallas_src>
from typing import Optional

import numpy as np
import jax
import jax.numpy as jnp
from jax.experimental import pallas as pl
from jax.experimental.pallas import tpu as pltpu


# -----------------------------------------------------------------------------
# Pallas kernels: tiled dual matmul with relu/min split, f32 output accumulation
# -----------------------------------------------------------------------------
def _backsub_kernel_dual(cl_ref, cu_ref, pl_ref, pu_ref, ol_ref, ou_ref):
    @pl.when(pl.program_id(2) == 0)
    def _():
        ol_ref[...] = jnp.zeros_like(ol_ref)
        ou_ref[...] = jnp.zeros_like(ou_ref)

    cl = cl_ref[...]          # (tm, tk)
    cu = cu_ref[...]          # (tm, tk)
    plm = pl_ref[...]         # (tk, tn)  -- augmented lower parent matrix
    pum = pu_ref[...]         # (tk, tn)  -- augmented upper parent matrix

    cl_p = jnp.maximum(cl, 0.0)
    cl_n = cl - cl_p          # == min(cl, 0)
    cu_p = jnp.maximum(cu, 0.0)
    cu_n = cu - cu_p          # == min(cu, 0)

    # Grouped by RHS (each RHS tile pushed to the MXU once per pair), one
    # accumulate per dot so results stream straight into the output block.
    ol_ref[...] += jnp.dot(cl_p, plm, preferred_element_type=jnp.float32)
    ou_ref[...] += jnp.dot(cu_n, plm, preferred_element_type=jnp.float32)
    ou_ref[...] += jnp.dot(cu_p, pum, preferred_element_type=jnp.float32)
    ol_ref[...] += jnp.dot(cl_n, pum, preferred_element_type=jnp.float32)


def _backsub_kernel_single(c_ref, pl_ref, pu_ref, ol_ref, ou_ref):
    # Variant for CL == CU (always true for a fresh LinearTransformer polygon):
    # one LHS stream, relu/min split computed once.
    @pl.when(pl.program_id(2) == 0)
    def _():
        ol_ref[...] = jnp.zeros_like(ol_ref)
        ou_ref[...] = jnp.zeros_like(ou_ref)

    c = c_ref[...]            # (tm, tk)
    plm = pl_ref[...]         # (tk, tn)
    pum = pu_ref[...]         # (tk, tn)

    c_p = jnp.maximum(c, 0.0)
    c_n = c - c_p             # == min(c, 0)

    ol_ref[...] += jnp.dot(c_p, plm, preferred_element_type=jnp.float32)
    ou_ref[...] += jnp.dot(c_n, plm, preferred_element_type=jnp.float32)
    ou_ref[...] += jnp.dot(c_p, pum, preferred_element_type=jnp.float32)
    ol_ref[...] += jnp.dot(c_n, pum, preferred_element_type=jnp.float32)


# -----------------------------------------------------------------------------
# pallas_call wrapper: adaptive tiling + padding
# -----------------------------------------------------------------------------
def _round_up(x: int, m: int) -> int:
    return ((x + m - 1) // m) * m


def _pick_tile(dim: int, cap: int, align: int):
    """Return (tile, padded_dim): tile is a multiple of `align`, <= cap (caps
    are multiples of align), and padded_dim = n_tiles * tile overshoots `dim`
    by at most ~one align-group per tile rather than up to a full tile."""
    if dim <= 0:
        return align, align
    n_tiles = -(-dim // cap)                      # ceil(dim / cap)
    tile = _round_up(-(-dim // n_tiles), align)   # round_up(ceil(dim/n), align)
    return tile, n_tiles * tile


def _pad2(a, rows: int, cols: int):
    r, c = a.shape
    if r == rows and c == cols:
        return a
    return jnp.pad(a, ((0, rows - r), (0, cols - c)))


def _backsub_matmul(cl2, cu2, pl2, pu2, *, tm_cap=512, tk_cap=512, tn_cap=512):
    """cl2 (and cu2, or cu2=None if identical): (R, K); pl2, pu2: (K, N).
    Returns OL, OU: (R, N) float32."""
    f32 = jnp.float32
    single = cu2 is None
    cl2 = cl2.astype(f32)
    pl2 = pl2.astype(f32)
    pu2 = pu2.astype(f32)

    R, K = cl2.shape
    N = pl2.shape[1]

    tm, Rp = _pick_tile(R, tm_cap, 8)
    tk, Kp = _pick_tile(K, tk_cap, 128)
    tn, Np = _pick_tile(N, tn_cap, 128)

    # Zero-padding is exact: relu(0) = min(0,0) = 0 and zero rows/cols
    # contribute nothing to the accumulation.
    cl_p = _pad2(cl2, Rp, Kp)
    pl_p = _pad2(pl2, Kp, Np)
    pu_p = _pad2(pu2, Kp, Np)

    grid = (Rp // tm, Np // tn, Kp // tk)   # reduction axis (k) last

    lhs_spec = pl.BlockSpec((tm, tk), lambda i, j, k: (i, k))
    rhs_spec = pl.BlockSpec((tk, tn), lambda i, j, k: (k, j))
    out_spec = pl.BlockSpec((tm, tn), lambda i, j, k: (i, j))

    compiler_params = pltpu.CompilerParams(
        dimension_semantics=("parallel", "parallel", "arbitrary"),
        vmem_limit_bytes=32 * 1024 * 1024)

    out_shape = (jax.ShapeDtypeStruct((Rp, Np), f32),
                 jax.ShapeDtypeStruct((Rp, Np), f32))
    out_specs = (out_spec, out_spec)

    if single:
        ol, ou = pl.pallas_call(
            _backsub_kernel_single,
            grid=grid,
            in_specs=[lhs_spec, rhs_spec, rhs_spec],
            out_specs=out_specs,
            out_shape=out_shape,
            compiler_params=compiler_params,
        )(cl_p, pl_p, pu_p)
    else:
        cu_p = _pad2(cu2.astype(f32), Rp, Kp)
        ol, ou = pl.pallas_call(
            _backsub_kernel_dual,
            grid=grid,
            in_specs=[lhs_spec, lhs_spec, rhs_spec, rhs_spec],
            out_specs=out_specs,
            out_shape=out_shape,
            compiler_params=compiler_params,
        )(cl_p, cu_p, pl_p, pu_p)

    return ol[:R, :N], ou[:R, :N]


# -----------------------------------------------------------------------------
# One back-substitution step (child polygon against its parent)
# -----------------------------------------------------------------------------
def _backsub_step(cl, cu, clb, cub, plc, puc, plb, pub):
    """Mirrors one iteration of the torch Polygon.__init__ while-loop.

    cl, cu : (Bc, M, K)   child coefficients
    clb,cub: (Bc, M)      child biases
    plc,puc: (Bp, K, N)   parent ORIGINAL coefficients
    plb,pub: (Bb, K)      parent ORIGINAL biases
    """
    f32 = jnp.float32
    Bc, M, K = cl.shape
    Bp, _, N = plc.shape
    Bb = plb.shape[0]
    Bco = max(Bc, Bp)   # output coefficient batch (torch broadcasting)

    if Bc == 1 and (Bp == 1 or N == 0):
        # Hot path (always taken for LinearTransformer chains): coefficient
        # matrices are batch-invariant. One 2-D Pallas matmul with parent
        # biases folded in as augmented columns.
        pl_aug = jnp.concatenate([plc[0].astype(f32), plb.astype(f32).T], axis=1)
        pu_aug = jnp.concatenate([puc[0].astype(f32), pub.astype(f32).T], axis=1)

        # Trace-time identity: fresh LinearTransformer polygons have
        # l_coefs is u_coefs -> single-LHS kernel (half the LHS traffic).
        cu2 = None if (cu is cl) else cu[0]
        ol, ou = _backsub_matmul(cl[0], cu2, pl_aug, pu_aug)   # (M, N + Bb)

        ncl = ol[:, :N][None]                # (1, M, N)
        ncu = ou[:, :N][None]
        if Bco > 1:                          # only possible when N == 0 (no data)
            ncl = jnp.broadcast_to(ncl, (Bco, M, N))
            ncu = jnp.broadcast_to(ncu, (Bco, M, N))
        nlb = clb.astype(f32) + ol[:, N:].T  # (Bb, M) (broadcast over Bc == 1)
        nub = cub.astype(f32) + ou[:, N:].T
        return ncl, ncu, nlb, nub

    # Cold fallback (never reached by LinearTransformer chains): batch-dependent
    # coefficients. Tiny / rare, so let XLA handle it directly.
    lp = jnp.maximum(cl, 0.0)
    ln = cl - lp
    up = jnp.maximum(cu, 0.0)
    un = cu - up
    ncl = lp @ plc + ln @ puc
    ncu = up @ puc + un @ plc
    nlb = clb + (lp * plb[:, None, :]).sum(-1) + (ln * pub[:, None, :]).sum(-1)
    nub = cub + (up * pub[:, None, :]).sum(-1) + (un * plb[:, None, :]).sum(-1)
    return ncl, ncu, nlb, nub


# -----------------------------------------------------------------------------
# Polygon / LinearTransformer (JAX port of the PyTorch module)
# -----------------------------------------------------------------------------
class Polygon:
    def __init__(self, l_coefs, u_coefs, l_bias, u_bias, parent: Optional['Polygon']):
        # Store the original per-layer representation (exactly like the torch code).
        self.l_coefs = l_coefs
        self.u_coefs = u_coefs
        self.l_bias = l_bias
        self.u_bias = u_bias
        self.parent = parent

        # Back-substitution down the parent chain (Pallas hot path).
        # TODO(synk): fuse this whole chain into one pallas_call with the
        # running CL/CU block resident in VMEM (pltpu.emit_pipeline over layers).
        while parent is not None:
            l_coefs, u_coefs, l_bias, u_bias = _backsub_step(
                l_coefs, u_coefs, l_bias, u_bias,
                parent.l_coefs, parent.u_coefs, parent.l_bias, parent.u_bias)
            parent = parent.parent

        self.l_bound = l_bias
        self.u_bound = u_bias

    @staticmethod
    def create_from_input(input_tensor, eps: float) -> 'Polygon':
        batch = input_tensor.shape[0]
        input_size = int(np.prod(input_tensor.shape[1:]))
        flat = input_tensor.reshape(batch, input_size).astype(jnp.float32)
        return Polygon(
            l_coefs=jnp.zeros((batch, input_size, 0), jnp.float32),
            u_coefs=jnp.zeros((batch, input_size, 0), jnp.float32),
            l_bias=jnp.clip(flat - eps, 0.0, 1.0),
            u_bias=jnp.clip(flat + eps, 0.0, 1.0),
            parent=None)

    def evaluate(self):
        return self.l_bound, self.u_bound


class LinearTransformer:
    def __init__(self, weight, bias):
        self.weight = weight.astype(jnp.float32)   # (out_new, in_features)
        self.bias = bias.astype(jnp.float32)       # (out_new,)

    def __call__(self, x: Polygon) -> Polygon:
        w = self.weight[None, :, :]   # shared object: enables single-LHS kernel
        b = self.bias[None, :]
        return Polygon(l_coefs=w, u_coefs=w, l_bias=b, u_bias=b, parent=x)


# -----------------------------------------------------------------------------
# Pure-numpy reference (mirrors the PyTorch semantics) for verification
# -----------------------------------------------------------------------------
def _ref_chain(x_img, eps, layers):
    batch = x_img.shape[0]
    n = int(np.prod(x_img.shape[1:]))
    flat = np.asarray(x_img, dtype=np.float64).reshape(batch, n)
    chain = [dict(lc=np.zeros((batch, n, 0)), uc=np.zeros((batch, n, 0)),
                  lb=np.clip(flat - eps, 0.0, 1.0), ub=np.clip(flat + eps, 0.0, 1.0))]
    lb = ub = None
    for W, b in layers:
        W = np.asarray(W, dtype=np.float64)
        b = np.asarray(b, dtype=np.float64)
        lc, uc, lb, ub = W[None], W[None], b[None], b[None]
        for p in reversed(chain):
            lp, ln = np.maximum(lc, 0.0), np.minimum(lc, 0.0)
            up, un = np.maximum(uc, 0.0), np.minimum(uc, 0.0)
            lc_new = lp @ p['lc'] + ln @ p['uc']
            uc_new = up @ p['uc'] + un @ p['lc']
            lb_new = lb + (lp * p['lb'][:, None, :]).sum(-1) + (ln * p['ub'][:, None, :]).sum(-1)
            ub_new = ub + (up * p['ub'][:, None, :]).sum(-1) + (un * p['lb'][:, None, :]).sum(-1)
            lc, uc, lb, ub = lc_new, uc_new, lb_new, ub_new
        chain.append(dict(lc=W[None], uc=W[None], lb=b[None], ub=b[None]))
    return lb, ub


# -----------------------------------------------------------------------------
# Demo
# -----------------------------------------------------------------------------
if __name__ == "__main__":
    key = jax.random.PRNGKey(0)
    k_in, k_w1, k_b1, k_w2, k_b2 = jax.random.split(key, 5)

    batch, c, h, w = 2, 1, 8, 8          # input image, flattened -> 64 features
    in_features = c * h * w
    hidden, out_features = 32, 16
    eps = 0.03

    x_img = jax.random.uniform(k_in, (batch, c, h, w), jnp.float32)
    W1 = jax.random.normal(k_w1, (hidden, in_features), jnp.float32) * 0.1
    b1 = jax.random.normal(k_b1, (hidden,), jnp.float32) * 0.1
    W2 = jax.random.normal(k_w2, (out_features, hidden), jnp.float32) * 0.1
    b2 = jax.random.normal(k_b2, (out_features,), jnp.float32) * 0.1

    # Build the abstract domain and run two LinearTransformers.
    poly0 = Polygon.create_from_input(x_img, eps)
    lt1 = LinearTransformer(W1, b1)
    lt2 = LinearTransformer(W2, b2)
    poly1 = lt1(poly0)                   # back-subst. against the input polygon
    poly2 = lt2(poly1)                   # full (coef + bias) step, then input step

    lb, ub = poly2.evaluate()
    lb = jax.block_until_ready(lb)
    ub = jax.block_until_ready(ub)

    # Verify against a pure-numpy reference of the PyTorch semantics.
    ref_lb2, ref_ub2 = _ref_chain(x_img, eps, [(W1, b1), (W2, b2)])
    np.testing.assert_allclose(np.asarray(lb), ref_lb2, rtol=1e-4, atol=1e-4)
    np.testing.assert_allclose(np.asarray(ub), ref_ub2, rtol=1e-4, atol=1e-4)

    ref_lb1, ref_ub1 = _ref_chain(x_img, eps, [(W1, b1)])
    np.testing.assert_allclose(np.asarray(poly1.l_bound), ref_lb1, rtol=1e-4, atol=1e-4)
    np.testing.assert_allclose(np.asarray(poly1.u_bound), ref_ub1, rtol=1e-4, atol=1e-4)

    assert lb.shape == (batch, out_features) and ub.shape == (batch, out_features)
    assert bool(jnp.all(lb <= ub))

    print("KERNEL_OK")
</pallas_src>

<mosaic_0001>
module attributes {stable_mosaic.version = 11 : i64} {
  func.func @_backsub_kernel_single(%arg0: i32, %arg1: i32, %arg2: i32, %arg3: memref<32x128xf32, #tpu.memory_space<vmem>>, %arg4: memref<128x128xf32, #tpu.memory_space<vmem>>, %arg5: memref<128x128xf32, #tpu.memory_space<vmem>>, %arg6: memref<32x128xf32, #tpu.memory_space<vmem>>, %arg7: memref<32x128xf32, #tpu.memory_space<vmem>>) attributes {dimension_semantics = [#tpu.dimension_semantics<parallel>, #tpu.dimension_semantics<parallel>, #tpu.dimension_semantics<arbitrary>], iteration_bounds = array<i64: 1, 1, 1>, scalar_prefetch = 0 : i64, scratch_operands = 0 : i64, tpu.core_type = #tpu.core_type<tc>, window_params = [{transform_indices = @transform_0, window_bounds = array<i64: 32, 128>}, {transform_indices = @transform_1, window_bounds = array<i64: 128, 128>}, {transform_indices = @transform_2, window_bounds = array<i64: 128, 128>}, {transform_indices = @transform_3, window_bounds = array<i64: 32, 128>}, {transform_indices = @transform_4, window_bounds = array<i64: 32, 128>}]} {
    %c0_i32 = arith.constant 0 : i32
    %0 = arith.cmpi eq, %arg2, %c0_i32 : i32
    %1 = arith.extui %0 : i1 to i32
    %c0_i32_0 = arith.constant 0 : i32
    %2 = arith.cmpi ne, %1, %c0_i32_0 : i32
    scf.if %2 {
      %cst_26 = arith.constant 0.000000e+00 : f32
      %25 = vector.broadcast %cst_26 : f32 to vector<32x128xf32>
      %c0_27 = arith.constant 0 : index
      %c0_28 = arith.constant 0 : index
      %26 = vector.load %arg6[%c0_27, %c0_28] : memref<32x128xf32, #tpu.memory_space<vmem>>, vector<32x128xf32>
      tpu.vector_store %arg6[%c0_27, %c0_28], %25 {strides = array<i32>} : memref<32x128xf32, #tpu.memory_space<vmem>>, vector<32x128xf32>,
      %cst_29 = arith.constant 0.000000e+00 : f32
      %27 = vector.broadcast %cst_29 : f32 to vector<32x128xf32>
      %c0_30 = arith.constant 0 : index
      %c0_31 = arith.constant 0 : index
      %28 = vector.load %arg7[%c0_30, %c0_31] : memref<32x128xf32, #tpu.memory_space<vmem>>, vector<32x128xf32>
      tpu.vector_store %arg7[%c0_30, %c0_31], %27 {strides = array<i32>} : memref<32x128xf32, #tpu.memory_space<vmem>>, vector<32x128xf32>,
    } else {
    }
    %c0 = arith.constant 0 : index
    %c0_1 = arith.constant 0 : index
    %3 = vector.load %arg3[%c0, %c0_1] : memref<32x128xf32, #tpu.memory_space<vmem>>, vector<32x128xf32>
    %c0_2 = arith.constant 0 : index
    %c0_3 = arith.constant 0 : index
    %4 = vector.load %arg4[%c0_2, %c0_3] : memref<128x128xf32, #tpu.memory_space<vmem>>, vector<128x128xf32>
    %c0_4 = arith.constant 0 : index
    %c0_5 = arith.constant 0 : index
    %5 = vector.load %arg5[%c0_4, %c0_5] : memref<128x128xf32, #tpu.memory_space<vmem>>, vector<128x128xf32>
    %cst = arith.constant 0.000000e+00 : f32
    %6 = vector.broadcast %cst : f32 to vector<32x128xf32>
    %7 = arith.maximumf %3, %6 : vector<32x128xf32>
    %8 = arith.subf %3, %7 : vector<32x128xf32>
    %c0_6 = arith.constant 0 : index
    %c0_7 = arith.constant 0 : index
    %9 = vector.load %arg6[%c0_6, %c0_7] : memref<32x128xf32, #tpu.memory_space<vmem>>, vector<32x128xf32>
    %cst_8 = arith.constant dense<0.000000e+00> : vector<32x128xf32>
    %10 = tpu.matmul %7, %4, %cst_8 {dimension_numbers = #tpu.dot_dimension_numbers<[1], [0], [0], [1], [0, 0, 1, 1], [], []>} : vector<32x128xf32>, vector<128x128xf32>, vector<32x128xf32> -> vector<32x128xf32>
    %11 = arith.addf %9, %10 : vector<32x128xf32>
    %c0_9 = arith.constant 0 : index
    %c0_10 = arith.constant 0 : index
    %12 = vector.load %arg6[%c0_9, %c0_10] : memref<32x128xf32, #tpu.memory_space<vmem>>, vector<32x128xf32>
    tpu.vector_store %arg6[%c0_9, %c0_10], %11 {strides = array<i32>} : memref<32x128xf32, #tpu.memory_space<vmem>>, vector<32x128xf32>,
    %c0_11 = arith.constant 0 : index
    %c0_12 = arith.constant 0 : index
    %13 = vector.load %arg7[%c0_11, %c0_12] : memref<32x128xf32, #tpu.memory_space<vmem>>, vector<32x128xf32>
    %cst_13 = arith.constant dense<0.000000e+00> : vector<32x128xf32>
    %14 = tpu.matmul %8, %4, %cst_13 {dimension_numbers = #tpu.dot_dimension_numbers<[1], [0], [0], [1], [0, 0, 1, 1], [], []>} : vector<32x128xf32>, vector<128x128xf32>, vector<32x128xf32> -> vector<32x128xf32>
    %15 = arith.addf %13, %14 : vector<32x128xf32>
    %c0_14 = arith.constant 0 : index
    %c0_15 = arith.constant 0 : index
    %16 = vector.load %arg7[%c0_14, %c0_15] : memref<32x128xf32, #tpu.memory_space<vmem>>, vector<32x128xf32>
    tpu.vector_store %arg7[%c0_14, %c0_15], %15 {strides = array<i32>} : memref<32x128xf32, #tpu.memory_space<vmem>>, vector<32x128xf32>,
    %c0_16 = arith.constant 0 : index
    %c0_17 = arith.constant 0 : index
    %17 = vector.load %arg7[%c0_16, %c0_17] : memref<32x128xf32, #tpu.memory_space<vmem>>, vector<32x128xf32>
    %cst_18 = arith.constant dense<0.000000e+00> : vector<32x128xf32>
    %18 = tpu.matmul %7, %5, %cst_18 {dimension_numbers = #tpu.dot_dimension_numbers<[1], [0], [0], [1], [0, 0, 1, 1], [], []>} : vector<32x128xf32>, vector<128x128xf32>, vector<32x128xf32> -> vector<32x128xf32>
    %19 = arith.addf %17, %18 : vector<32x128xf32>
    %c0_19 = arith.constant 0 : index
    %c0_20 = arith.constant 0 : index
    %20 = vector.load %arg7[%c0_19, %c0_20] : memref<32x128xf32, #tpu.memory_space<vmem>>, vector<32x128xf32>
    tpu.vector_store %arg7[%c0_19, %c0_20], %19 {strides = array<i32>} : memref<32x128xf32, #tpu.memory_space<vmem>>, vector<32x128xf32>,
    %c0_21 = arith.constant 0 : index
    %c0_22 = arith.constant 0 : index
    %21 = vector.load %arg6[%c0_21, %c0_22] : memref<32x128xf32, #tpu.memory_space<vmem>>, vector<32x128xf32>
    %cst_23 = arith.constant dense<0.000000e+00> : vector<32x128xf32>
    %22 = tpu.matmul %8, %5, %cst_23 {dimension_numbers = #tpu.dot_dimension_numbers<[1], [0], [0], [1], [0, 0, 1, 1], [], []>} : vector<32x128xf32>, vector<128x128xf32>, vector<32x128xf32> -> vector<32x128xf32>
    %23 = arith.addf %21, %22 : vector<32x128xf32>
    %c0_24 = arith.constant 0 : index
    %c0_25 = arith.constant 0 : index
    %24 = vector.load %arg6[%c0_24, %c0_25] : memref<32x128xf32, #tpu.memory_space<vmem>>, vector<32x128xf32>
    tpu.vector_store %arg6[%c0_24, %c0_25], %23 {strides = array<i32>} : memref<32x128xf32, #tpu.memory_space<vmem>>, vector<32x128xf32>,
    return
  }
  func.func @transform_0(%arg0: i32, %arg1: i32, %arg2: i32) -> (i32, i32) {
    %c0_i32 = arith.constant 0 : i32
    return %arg0, %arg2 : i32, i32
  }
  func.func @transform_1(%arg0: i32, %arg1: i32, %arg2: i32) -> (i32, i32) {
    %c0_i32 = arith.constant 0 : i32
    return %arg2, %arg1 : i32, i32
  }
  func.func @transform_2(%arg0: i32, %arg1: i32, %arg2: i32) -> (i32, i32) {
    %c0_i32 = arith.constant 0 : i32
    return %arg2, %arg1 : i32, i32
  }
  func.func @transform_3(%arg0: i32, %arg1: i32, %arg2: i32) -> (i32, i32) {
    %c0_i32 = arith.constant 0 : i32
    return %arg0, %arg1 : i32, i32
  }
  func.func @transform_4(%arg0: i32, %arg1: i32, %arg2: i32) -> (i32, i32) {
    %c0_i32 = arith.constant 0 : i32
    return %arg0, %arg1 : i32, i32
  }
}

</mosaic_0001>

<llo_original>
// kernel: tpu_custom_call.1
$region0: #{tpu_custom_call.1}
  #allocation0 [shape = 'u32[]', space=smem, size = 0x4, offset = 0x4, fixed_abs, tag = 'smem constant byte address 0x4 - core index']
  #allocation1 [shape = 'u32[144,128]{1,0:T(1,128)}', space=vmem, size = 0x12000, scoped, tag = 'internal scratch']
  %s0 = inlined_call_operand.hbm [shape: f32[32,128], index: 0, kind: input, shape index: {}]
  %s1 = inlined_call_operand.hbm [shape: f32[128,128], index: 1, kind: input, shape index: {}]
  %s2 = inlined_call_operand.hbm [shape: f32[128,128], index: 2, kind: input, shape index: {}]
  %s3 = inlined_call_operand.hbm [shape: f32[32,128], index: 3, kind: output, shape index: {0}]
  %s4 = inlined_call_operand.hbm [shape: f32[32,128], index: 4, kind: output, shape index: {1}]
  %5 = xla_tuple %s3, %s4
  %s6 = sld [smem:[#allocation0]]
  $region46: #{tpu_custom_call.1} parent=0
    _
  %s8 = ssub.s32 1, %s6
  %s9 = scalar_select 0, %s8, %s6
  $region1: #{tpu_custom_call.1} parent=0
    #allocation2 [shape = 'u8[16384]{0}', space=vmem, size = 0x4000, scoped, tag = 'input window, operand 0, single buffered']
    #allocation3 [shape = 's32[1]{0}', space=sflag, size = 0x4, scoped, tag = 'scoped memory for tpu_custom_call.1']
    #allocation4 [shape = 's32[1]{0}', space=sflag, size = 0x4, scoped, tag = 'scoped memory for tpu_custom_call.1']
    #allocation5 [shape = 'u8[65536]{0}', space=vmem, size = 0x10000, scoped, tag = 'input window, operand 1, single buffered']
    #allocation6 [shape = 's32[1]{0}', space=sflag, size = 0x4, scoped, tag = 'scoped memory for tpu_custom_call.1']
    #allocation7 [shape = 'u8[65536]{0}', space=vmem, size = 0x10000, scoped, tag = 'input window, operand 2, single buffered']
    #allocation8 [shape = 'u8[16384]{0}', space=vmem, size = 0x4000, scoped, tag = 'output window, operand 0, single buffered']
    #allocation9 [shape = 'u8[16384]{0}', space=vmem, size = 0x4000, scoped, tag = 'output window, operand 1, single buffered']
    #allocation10 [shape = 's32[1]{0}', space=sflag, size = 0x4, scoped, tag = 'scoped memory for tpu_custom_call.1']
    %10 = vsyncpa [#allocation3], 0
    %11 = vsyncpa [#allocation6], 0
    %12 = vsyncpa [#allocation4], 0
    %13 = vsyncpa [#allocation10], 0
    // Predicated region
    $region2: #{tpu_custom_call.1} parent=1 // pred_check
      _
    $region3: #{tpu_custom_call.1} parent=1 // pred_check_branch
      %15 = sbr.rel (0) target = $region5
    $region4: #{tpu_custom_call.1} parent=1 // pred_region
      %s17 = ssub.s32 512, 512
      %18 = vsyncadd [#allocation3], %s17
      %s19 = sshll.u32 [#allocation2], 4
      %s20 = int_to_ptr.vmem [resolvable:$true] %s19
      %25 = dma.hbm_to_vmem [thread:$0]  %s0, 512, %s20, [#allocation3], 128, 128, 8
    $region5: #{tpu_custom_call.1} parent=1 // pred_fallthru
      _
    // Predicated region
    $region6: #{tpu_custom_call.1} parent=1 // pred_check
      _
    $region7: #{tpu_custom_call.1} parent=1 // pred_check_branch
      %27 = sbr.rel (0) target = $region9
    $region8: #{tpu_custom_call.1} parent=1 // pred_region
      %s29 = ssub.s32 2048, 2048
      %30 = vsyncadd [#allocation6], %s29
      %s31 = sshll.u32 [#allocation5], 4
      %s32 = int_to_ptr.vmem [resolvable:$true] %s31
      %37 = dma.hbm_to_vmem [thread:$0]  %s1, 2048, %s32, [#allocation6], 128, 128, 8
    $region9: #{tpu_custom_call.1} parent=1 // pred_fallthru
      _
    // Predicated region
    $region10: #{tpu_custom_call.1} parent=1 // pred_check
      _
    $region11: #{tpu_custom_call.1} parent=1 // pred_check_branch
      %39 = sbr.rel (0) target = $region13
    $region12: #{tpu_custom_call.1} parent=1 // pred_region
      %s41 = ssub.s32 2048, 2048
      %42 = vsyncadd [#allocation6], %s41
      %s43 = sshll.u32 [#allocation7], 4
      %s44 = int_to_ptr.vmem [resolvable:$true] %s43
      %49 = dma.hbm_to_vmem [thread:$0]  %s2, 2048, %s44, [#allocation6], 128, 128, 8
    $region13: #{tpu_custom_call.1} parent=1 // pred_fallthru
      _
    // Predicated region
    $region14: #{tpu_custom_call.1} parent=1 // pred_check
      _
    $region15: #{tpu_custom_call.1} parent=1 // pred_check_branch
      %51 = sbr.rel (0) target = $region17
    $region16: #{tpu_custom_call.1} parent=1 // pred_region
      %52 = dma.done [#allocation3], 512
    $region17: #{tpu_custom_call.1} parent=1 // pred_fallthru
      _
    // Predicated region
    $region18: #{tpu_custom_call.1} parent=1 // pred_check
      _
    $region19: #{tpu_custom_call.1} parent=1 // pred_check_branch
      %54 = sbr.rel (0) target = $region21
    $region20: #{tpu_custom_call.1} parent=1 // pred_region
      %55 = dma.done [#allocation6], 2048
    $region21: #{tpu_custom_call.1} parent=1 // pred_fallthru
      _
    // Predicated region
    $region22: #{tpu_custom_call.1} parent=1 // pred_check
      _
    $region23: #{tpu_custom_call.1} parent=1 // pred_check_branch
      %57 = sbr.rel (0) target = $region25
    $region24: #{tpu_custom_call.1} parent=1 // pred_region
      %58 = dma.done [#allocation6], 2048
    $region25: #{tpu_custom_call.1} parent=1 // pred_fallthru
      _
    %p59 = scmp.eq.s32.totalorder 0, 0
    // Predicated region
    $region26: #{tpu_custom_call.1} parent=1 // pred_check
      %p60 = pneg %p59
    $region27: #{tpu_custom_call.1} parent=1 // pred_check_branch
      %62 = sbr.rel (%p60) target = $region29
    $region28: #{tpu_custom_call.1} parent=1 // pred_region
      %63 = vst [vmem:[#allocation8] sm:$0xff] 0.0
      %64 = vst [vmem:[#allocation8 + $0x8] sm:$0xff] 0.0
      %65 = vst [vmem:[#allocation8 + $0x10] sm:$0xff] 0.0
      %66 = vst [vmem:[#allocation8 + $0x18] sm:$0xff] 0.0
      %67 = vst [vmem:[#allocation9] sm:$0xff] 0.0
      %68 = vst [vmem:[#allocation9 + $0x8] sm:$0xff] 0.0
      %69 = vst [vmem:[#allocation9 + $0x10] sm:$0xff] 0.0
      %70 = vst [vmem:[#allocation9 + $0x18] sm:$0xff] 0.0
    $region29: #{tpu_custom_call.1} parent=1 // pred_fallthru
      _
    %v71 = vld [vmem:[#allocation2] sm:$0xff]
    %v72 = vld [vmem:[#allocation2 + $0x8] sm:$0xff]
    %v73 = vld [vmem:[#allocation2 + $0x10] sm:$0xff]
    %v74 = vld [vmem:[#allocation2 + $0x18] sm:$0xff]
    %v75 = vld [vmem:[#allocation5] sm:$0xff]
    %v76 = vld [vmem:[#allocation5 + $0x8] sm:$0xff]
    %v77 = vld [vmem:[#allocation5 + $0x10] sm:$0xff]
    %v78 = vld [vmem:[#allocation5 + $0x18] sm:$0xff]
    %v79 = vld [vmem:[#allocation5 + $0x20] sm:$0xff]
    %v80 = vld [vmem:[#allocation5 + $0x28] sm:$0xff]
    %v81 = vld [vmem:[#allocation5 + $0x30] sm:$0xff]
    %v82 = vld [vmem:[#allocation5 + $0x38] sm:$0xff]
    %v83 = vld [vmem:[#allocation5 + $0x40] sm:$0xff]
    %v84 = vld [vmem:[#allocation5 + $0x48] sm:$0xff]
    %v85 = vld [vmem:[#allocation5 + $0x50] sm:$0xff]
    %v86 = vld [vmem:[#allocation5 + $0x58] sm:$0xff]
    %v87 = vld [vmem:[#allocation5 + $0x60] sm:$0xff]
    %v88 = vld [vmem:[#allocation5 + $0x68] sm:$0xff]
    %v89 = vld [vmem:[#allocation5 + $0x70] sm:$0xff]
    %v90 = vld [vmem:[#allocation5 + $0x78] sm:$0xff]
    %v91 = vld [vmem:[#allocation7] sm:$0xff]
    %v92 = vld [vmem:[#allocation7 + $0x8] sm:$0xff]
    %v93 = vld [vmem:[#allocation7 + $0x10] sm:$0xff]
    %v94 = vld [vmem:[#allocation7 + $0x18] sm:$0xff]
    %v95 = vld [vmem:[#allocation7 + $0x20] sm:$0xff]
    %v96 = vld [vmem:[#allocation7 + $0x28] sm:$0xff]
    %v97 = vld [vmem:[#allocation7 + $0x30] sm:$0xff]
    %v98 = vld [vmem:[#allocation7 + $0x38] sm:$0xff]
    %v99 = vld [vmem:[#allocation7 + $0x40] sm:$0xff]
    %v100 = vld [vmem:[#allocation7 + $0x48] sm:$0xff]
    %v101 = vld [vmem:[#allocation7 + $0x50] sm:$0xff]
    %v102 = vld [vmem:[#allocation7 + $0x58] sm:$0xff]
    %v103 = vld [vmem:[#allocation7 + $0x60] sm:$0xff]
    %v104 = vld [vmem:[#allocation7 + $0x68] sm:$0xff]
    %v105 = vld [vmem:[#allocation7 + $0x70] sm:$0xff]
    %v106 = vld [vmem:[#allocation7 + $0x78] sm:$0xff]
    %v107 = vmax.f32 %v71, 0.0
    %v108 = vmax.f32 %v72, 0.0
    %v109 = vmax.f32 %v73, 0.0
    %v110 = vmax.f32 %v74, 0.0
    %v111 = vsub.f32 %v71, %v107
    %v112 = vsub.f32 %v72, %v108
    %v113 = vsub.f32 %v73, %v109
    %v114 = vsub.f32 %v74, %v110
    %v115 = vld [vmem:[#allocation8] sm:$0xff]
    %v116 = vld [vmem:[#allocation8 + $0x8] sm:$0xff]
    %v117 = vld [vmem:[#allocation8 + $0x10] sm:$0xff]
    %v118 = vld [vmem:[#allocation8 + $0x18] sm:$0xff]
    %119 = vmatprep.subr.mxu0 0.0
    %120 = vmatpush1.msra.mxu0 %v90
    %121 = vmatprep.subr.mxu0 0.0
    %122 = vmatpush1.msra.mxu0 %v89
    %123 = vmatprep.subr.mxu0 0.0
    %124 = vmatpush1.msra.mxu0 %v88
    %125 = vmatprep.subr.mxu0 0.0
    %126 = vmatpush1.msra.mxu0 %v87
    %127 = vmatprep.subr.mxu0 0.0
    %128 = vmatpush1.msra.mxu0 %v86
    %129 = vmatprep.subr.mxu0 0.0
    %130 = vmatpush1.msra.mxu0 %v85
    %131 = vmatprep.subr.mxu0 0.0
    %132 = vmatpush1.msra.mxu0 %v84
    %133 = vmatprep.subr.mxu0 0.0
    %134 = vmatpush1.msra.mxu0 %v83
    %135 = vmatprep.subr.mxu0 0.0
    %136 = vmatpush1.msra.mxu0 %v82
    %137 = vmatprep.subr.mxu0 0.0
    %138 = vmatpush1.msra.mxu0 %v81
    %139 = vmatprep.subr.mxu0 0.0
    %140 = vmatpush1.msra.mxu0 %v80
    %141 = vmatprep.subr.mxu0 0.0
    %142 = vmatpush1.msra.mxu0 %v79
    %143 = vmatprep.subr.mxu0 0.0
    %144 = vmatpush1.msra.mxu0 %v78
    %145 = vmatprep.subr.mxu0 0.0
    %146 = vmatpush1.msra.mxu0 %v77
    %147 = vmatprep.subr.mxu0 0.0
    %148 = vmatpush1.msra.mxu0 %v76
    %149 = vmatprep.subr.mxu0 0.0
    %150 = vmatpush1.msra.mxu0 %v75
    %151 = vmatprep.subr.mxu0 0.0
    %152 = vmatpush2.msra.mxu0 0.0
    %153 = vmatprep.subr.mxu0 0.0
    %154 = vmatpush2.msra.mxu0 0.0
    %155 = vmatprep.subr.mxu0 0.0
    %156 = vmatpush2.msra.mxu0 0.0
    %157 = vmatprep.subr.mxu0 0.0
    %158 = vmatpush2.msra.mxu0 0.0
    %159 = vmatprep.subr.mxu0 0.0
    %160 = vmatpush2.msra.mxu0 0.0
    %161 = vmatprep.subr.mxu0 0.0
    %162 = vmatpush2.msra.mxu0 0.0
    %163 = vmatprep.subr.mxu0 0.0
    %164 = vmatpush2.msra.mxu0 0.0
    %165 = vmatprep.subr.mxu0 0.0
    %166 = vmatpush2.msra.mxu0 0.0
    %167 = vmatprep.subr.mxu0 0.0
    %168 = vmatpush2.msra.mxu0 0.0
    %169 = vmatprep.subr.mxu0 0.0
    %170 = vmatpush2.msra.mxu0 0.0
    %171 = vmatprep.subr.mxu0 0.0
    %172 = vmatpush2.msra.mxu0 0.0
    %173 = vmatprep.subr.mxu0 0.0
    %174 = vmatpush2.msra.mxu0 0.0
    %175 = vmatprep.subr.mxu0 0.0
    %176 = vmatpush2.msra.mxu0 0.0
    %177 = vmatprep.subr.mxu0 0.0
    %178 = vmatpush2.msra.mxu0 0.0
    %179 = vmatprep.subr.mxu0 0.0
    %180 = vmatpush2.msra.mxu0 0.0
    %181 = vmatprep.subr.mxu0 0.0
    %182 = vmatpush2.msra.mxu0 0.0
    %183 = vmatprep.mubr.f32.mxu0 0.0
    %184 = vmatmul.mubr.f32.gmra.mxu0 %v107
    %v185 = vpop.f32.mrf.mxu0
    %v186 = vadd.f32 0.0, %v185
    %v187 = vpop.f32.mrf.mxu0
    %188 = vmatprep.mubr.f32.mxu0 0.0
    %189 = vmatmul.mubr.f32.gmra.mxu0 %v108
    %v190 = vpop.f32.mrf.mxu0
    %v191 = vadd.f32 0.0, %v190
    %v192 = vpop.f32.mrf.mxu0
    %193 = vmatprep.mubr.f32.mxu0 0.0
    %194 = vmatmul.mubr.f32.gmra.mxu0 %v109
    %v195 = vpop.f32.mrf.mxu0
    %v196 = vadd.f32 0.0, %v195
    %v197 = vpop.f32.mrf.mxu0
    %198 = vmatprep.mubr.f32.mxu0 0.0
    %199 = vmatmul.mubr.f32.gmra.mxu0 %v110
    %v200 = vpop.f32.mrf.mxu0
    %v201 = vadd.f32 0.0, %v200
    %v202 = vpop.f32.mrf.mxu0
    %203 = vdwg.mxu0
    %v204 = vadd.f32 %v115, %v186
    %v205 = vadd.f32 %v116, %v191
    %v206 = vadd.f32 %v117, %v196
    %v207 = vadd.f32 %v118, %v201
    %208 = vst [vmem:[#allocation8] sm:$0xff] %v204
    %209 = vst [vmem:[#allocation8 + $0x8] sm:$0xff] %v205
    %210 = vst [vmem:[#allocation8 + $0x10] sm:$0xff] %v206
    %211 = vst [vmem:[#allocation8 + $0x18] sm:$0xff] %v207
    %v212 = vld [vmem:[#allocation9] sm:$0xff]
    %v213 = vld [vmem:[#allocation9 + $0x8] sm:$0xff]
    %v214 = vld [vmem:[#allocation9 + $0x10] sm:$0xff]
    %v215 = vld [vmem:[#allocation9 + $0x18] sm:$0xff]
    %216 = vmatprep.subr.mxu0 0.0
    %217 = vmatpush1.msra.mxu0 %v90
    %218 = vmatprep.subr.mxu0 0.0
    %219 = vmatpush1.msra.mxu0 %v89
    %220 = vmatprep.subr.mxu0 0.0
    %221 = vmatpush1.msra.mxu0 %v88
    %222 = vmatprep.subr.mxu0 0.0
    %223 = vmatpush1.msra.mxu0 %v87
    %224 = vmatprep.subr.mxu0 0.0
    %225 = vmatpush1.msra.mxu0 %v86
    %226 = vmatprep.subr.mxu0 0.0
    %227 = vmatpush1.msra.mxu0 %v85
    %228 = vmatprep.subr.mxu0 0.0
    %229 = vmatpush1.msra.mxu0 %v84
    %230 = vmatprep.subr.mxu0 0.0
    %231 = vmatpush1.msra.mxu0 %v83
    %232 = vmatprep.subr.mxu0 0.0
    %233 = vmatpush1.msra.mxu0 %v82
    %234 = vmatprep.subr.mxu0 0.0
    %235 = vmatpush1.msra.mxu0 %v81
    %236 = vmatprep.subr.mxu0 0.0
    %237 = vmatpush1.msra.mxu0 %v80
    %238 = vmatprep.subr.mxu0 0.0
    %239 = vmatpush1.msra.mxu0 %v79
    %240 = vmatprep.subr.mxu0 0.0
    %241 = vmatpush1.msra.mxu0 %v78
    %242 = vmatprep.subr.mxu0 0.0
    %243 = vmatpush1.msra.mxu0 %v77
    %244 = vmatprep.subr.mxu0 0.0
    %245 = vmatpush1.msra.mxu0 %v76
    %246 = vmatprep.subr.mxu0 0.0
    %247 = vmatpush1.msra.mxu0 %v75
    %248 = vmatprep.subr.mxu0 0.0
    %249 = vmatpush2.msra.mxu0 0.0
    %250 = vmatprep.subr.mxu0 0.0
    %251 = vmatpush2.msra.mxu0 0.0
    %252 = vmatprep.subr.mxu0 0.0
    %253 = vmatpush2.msra.mxu0 0.0
    %254 = vmatprep.subr.mxu0 0.0
    %255 = vmatpush2.msra.mxu0 0.0
    %256 = vmatprep.subr.mxu0 0.0
    %257 = vmatpush2.msra.mxu0 0.0
    %258 = vmatprep.subr.mxu0 0.0
    %259 = vmatpush2.msra.mxu0 0.0
    %260 = vmatprep.subr.mxu0 0.0
    %261 = vmatpush2.msra.mxu0 0.0
    %262 = vmatprep.subr.mxu0 0.0
    %263 = vmatpush2.msra.mxu0 0.0
    %264 = vmatprep.subr.mxu0 0.0
    %265 = vmatpush2.msra.mxu0 0.0
    %266 = vmatprep.subr.mxu0 0.0
    %267 = vmatpush2.msra.mxu0 0.0
    %268 = vmatprep.subr.mxu0 0.0
    %269 = vmatpush2.msra.mxu0 0.0
    %270 = vmatprep.subr.mxu0 0.0
    %271 = vmatpush2.msra.mxu0 0.0
    %272 = vmatprep.subr.mxu0 0.0
    %273 = vmatpush2.msra.mxu0 0.0
    %274 = vmatprep.subr.mxu0 0.0
    %275 = vmatpush2.msra.mxu0 0.0
    %276 = vmatprep.subr.mxu0 0.0
    %277 = vmatpush2.msra.mxu0 0.0
    %278 = vmatprep.subr.mxu0 0.0
    %279 = vmatpush2.msra.mxu0 0.0
    %280 = vmatprep.mubr.f32.mxu0 0.0
    %281 = vmatmul.mubr.f32.gmra.mxu0 %v111
    %v282 = vpop.f32.mrf.mxu0
    %v283 = vadd.f32 0.0, %v282
    %v284 = vpop.f32.mrf.mxu0
    %285 = vmatprep.mubr.f32.mxu0 0.0
    %286 = vmatmul.mubr.f32.gmra.mxu0 %v112
    %v287 = vpop.f32.mrf.mxu0
    %v288 = vadd.f32 0.0, %v287
    %v289 = vpop.f32.mrf.mxu0
    %290 = vmatprep.mubr.f32.mxu0 0.0
    %291 = vmatmul.mubr.f32.gmra.mxu0 %v113
    %v292 = vpop.f32.mrf.mxu0
    %v293 = vadd.f32 0.0, %v292
    %v294 = vpop.f32.mrf.mxu0
    %295 = vmatprep.mubr.f32.mxu0 0.0
    %296 = vmatmul.mubr.f32.gmra.mxu0 %v114
    %v297 = vpop.f32.mrf.mxu0
    %v298 = vadd.f32 0.0, %v297
    %v299 = vpop.f32.mrf.mxu0
    %300 = vdwg.mxu0
    %v301 = vadd.f32 %v212, %v283
    %v302 = vadd.f32 %v213, %v288
    %v303 = vadd.f32 %v214, %v293
    %v304 = vadd.f32 %v215, %v298
    %305 = vst [vmem:[#allocation9] sm:$0xff] %v301
    %306 = vst [vmem:[#allocation9 + $0x8] sm:$0xff] %v302
    %307 = vst [vmem:[#allocation9 + $0x10] sm:$0xff] %v303
    %308 = vst [vmem:[#allocation9 + $0x18] sm:$0xff] %v304
    %v309 = vld [vmem:[#allocation9] sm:$0xff]
    %v310 = vld [vmem:[#allocation9 + $0x8] sm:$0xff]
    %v311 = vld [vmem:[#allocation9 + $0x10] sm:$0xff]
    %v312 = vld [vmem:[#allocation9 + $0x18] sm:$0xff]
    %313 = vmatprep.subr.mxu0 0.0
    %314 = vmatpush1.msra.mxu0 %v106
    %315 = vmatprep.subr.mxu0 0.0
    %316 = vmatpush1.msra.mxu0 %v105
    %317 = vmatprep.subr.mxu0 0.0
    %318 = vmatpush1.msra.mxu0 %v104
    %319 = vmatprep.subr.mxu0 0.0
    %320 = vmatpush1.msra.mxu0 %v103
    %321 = vmatprep.subr.mxu0 0.0
    %322 = vmatpush1.msra.mxu0 %v102
    %323 = vmatprep.subr.mxu0 0.0
    %324 = vmatpush1.msra.mxu0 %v101
    %325 = vmatprep.subr.mxu0 0.0
    %326 = vmatpush1.msra.mxu0 %v100
    %327 = vmatprep.subr.mxu0 0.0
    %328 = vmatpush1.msra.mxu0 %v99
    %329 = vmatprep.subr.mxu0 0.0
    %330 = vmatpush1.msra.mxu0 %v98
    %331 = vmatprep.subr.mxu0 0.0
    %332 = vmatpush1.msra.mxu0 %v97
    %333 = vmatprep.subr.mxu0 0.0
    %334 = vmatpush1.msra.mxu0 %v96
    %335 = vmatprep.subr.mxu0 0.0
    %336 = vmatpush1.msra.mxu0 %v95
    %337 = vmatprep.subr.mxu0 0.0
    %338 = vmatpush1.msra.mxu0 %v94
    %339 = vmatprep.subr.mxu0 0.0
    %340 = vmatpush1.msra.mxu0 %v93
    %341 = vmatprep.subr.mxu0 0.0
    %342 = vmatpush1.msra.mxu0 %v92
    %343 = vmatprep.subr.mxu0 0.0
    %344 = vmatpush1.msra.mxu0 %v91
    %345 = vmatprep.subr.mxu0 0.0
    %346 = vmatpush2.msra.mxu0 0.0
    %347 = vmatprep.subr.mxu0 0.0
    %348 = vmatpush2.msra.mxu0 0.0
    %349 = vmatprep.subr.mxu0 0.0
    %350 = vmatpush2.msra.mxu0 0.0
    %351 = vmatprep.subr.mxu0 0.0
    %352 = vmatpush2.msra.mxu0 0.0
    %353 = vmatprep.subr.mxu0 0.0
    %354 = vmatpush2.msra.mxu0 0.0
    %355 = vmatprep.subr.mxu0 0.0
    %356 = vmatpush2.msra.mxu0 0.0
    %357 = vmatprep.subr.mxu0 0.0
    %358 = vmatpush2.msra.mxu0 0.0
    %359 = vmatprep.subr.mxu0 0.0
    %360 = vmatpush2.msra.mxu0 0.0
    %361 = vmatprep.subr.mxu0 0.0
    %362 = vmatpush2.msra.mxu0 0.0
    %363 = vmatprep.subr.mxu0 0.0
    %364 = vmatpush2.msra.mxu0 0.0
    %365 = vmatprep.subr.mxu0 0.0
    %366 = vmatpush2.msra.mxu0 0.0
    %367 = vmatprep.subr.mxu0 0.0
    %368 = vmatpush2.msra.mxu0 0.0
    %369 = vmatprep.subr.mxu0 0.0
    %370 = vmatpush2.msra.mxu0 0.0
    %371 = vmatprep.subr.mxu0 0.0
    %372 = vmatpush2.msra.mxu0 0.0
    %373 = vmatprep.subr.mxu0 0.0
    %374 = vmatpush2.msra.mxu0 0.0
    %375 = vmatprep.subr.mxu0 0.0
    %376 = vmatpush2.msra.mxu0 0.0
    %377 = vmatprep.mubr.f32.mxu0 0.0
    %378 = vmatmul.mubr.f32.gmra.mxu0 %v107
    %v379 = vpop.f32.mrf.mxu0
    %v380 = vadd.f32 0.0, %v379
    %v381 = vpop.f32.mrf.mxu0
    %382 = vmatprep.mubr.f32.mxu0 0.0
    %383 = vmatmul.mubr.f32.gmra.mxu0 %v108
    %v384 = vpop.f32.mrf.mxu0
    %v385 = vadd.f32 0.0, %v384
    %v386 = vpop.f32.mrf.mxu0
    %387 = vmatprep.mubr.f32.mxu0 0.0
    %388 = vmatmul.mubr.f32.gmra.mxu0 %v109
    %v389 = vpop.f32.mrf.mxu0
    %v390 = vadd.f32 0.0, %v389
    %v391 = vpop.f32.mrf.mxu0
    %392 = vmatprep.mubr.f32.mxu0 0.0
    %393 = vmatmul.mubr.f32.gmra.mxu0 %v110
    %v394 = vpop.f32.mrf.mxu0
    %v395 = vadd.f32 0.0, %v394
    %v396 = vpop.f32.mrf.mxu0
    %397 = vdwg.mxu0
    %v398 = vadd.f32 %v309, %v380
    %v399 = vadd.f32 %v310, %v385
    %v400 = vadd.f32 %v311, %v390
    %v401 = vadd.f32 %v312, %v395
    %402 = vst [vmem:[#allocation9] sm:$0xff] %v398
    %403 = vst [vmem:[#allocation9 + $0x8] sm:$0xff] %v399
    %404 = vst [vmem:[#allocation9 + $0x10] sm:$0xff] %v400
    %405 = vst [vmem:[#allocation9 + $0x18] sm:$0xff] %v401
    %v406 = vld [vmem:[#allocation8] sm:$0xff]
    %v407 = vld [vmem:[#allocation8 + $0x8] sm:$0xff]
    %v408 = vld [vmem:[#allocation8 + $0x10] sm:$0xff]
    %v409 = vld [vmem:[#allocation8 + $0x18] sm:$0xff]
    %410 = vmatprep.subr.mxu0 0.0
    %411 = vmatpush1.msra.mxu0 %v106
    %412 = vmatprep.subr.mxu0 0.0
    %413 = vmatpush1.msra.mxu0 %v105
    %414 = vmatprep.subr.mxu0 0.0
    %415 = vmatpush1.msra.mxu0 %v104
    %416 = vmatprep.subr.mxu0 0.0
    %417 = vmatpush1.msra.mxu0 %v103
    %418 = vmatprep.subr.mxu0 0.0
    %419 = vmatpush1.msra.mxu0 %v102
    %420 = vmatprep.subr.mxu0 0.0
    %421 = vmatpush1.msra.mxu0 %v101
    %422 = vmatprep.subr.mxu0 0.0
    %423 = vmatpush1.msra.mxu0 %v100
    %424 = vmatprep.subr.mxu0 0.0
    %425 = vmatpush1.msra.mxu0 %v99
    %426 = vmatprep.subr.mxu0 0.0
    %427 = vmatpush1.msra.mxu0 %v98
    %428 = vmatprep.subr.mxu0 0.0
    %429 = vmatpush1.msra.mxu0 %v97
    %430 = vmatprep.subr.mxu0 0.0
    %431 = vmatpush1.msra.mxu0 %v96
    %432 = vmatprep.subr.mxu0 0.0
    %433 = vmatpush1.msra.mxu0 %v95
    %434 = vmatprep.subr.mxu0 0.0
    %435 = vmatpush1.msra.mxu0 %v94
    %436 = vmatprep.subr.mxu0 0.0
    %437 = vmatpush1.msra.mxu0 %v93
    %438 = vmatprep.subr.mxu0 0.0
    %439 = vmatpush1.msra.mxu0 %v92
    %440 = vmatprep.subr.mxu0 0.0
    %441 = vmatpush1.msra.mxu0 %v91
    %442 = vmatprep.subr.mxu0 0.0
    %443 = vmatpush2.msra.mxu0 0.0
    %444 = vmatprep.subr.mxu0 0.0
    %445 = vmatpush2.msra.mxu0 0.0
    %446 = vmatprep.subr.mxu0 0.0
    %447 = vmatpush2.msra.mxu0 0.0
    %448 = vmatprep.subr.mxu0 0.0
    %449 = vmatpush2.msra.mxu0 0.0
    %450 = vmatprep.subr.mxu0 0.0
    %451 = vmatpush2.msra.mxu0 0.0
    %452 = vmatprep.subr.mxu0 0.0
    %453 = vmatpush2.msra.mxu0 0.0
    %454 = vmatprep.subr.mxu0 0.0
    %455 = vmatpush2.msra.mxu0 0.0
    %456 = vmatprep.subr.mxu0 0.0
    %457 = vmatpush2.msra.mxu0 0.0
    %458 = vmatprep.subr.mxu0 0.0
    %459 = vmatpush2.msra.mxu0 0.0
    %460 = vmatprep.subr.mxu0 0.0
    %461 = vmatpush2.msra.mxu0 0.0
    %462 = vmatprep.subr.mxu0 0.0
    %463 = vmatpush2.msra.mxu0 0.0
    %464 = vmatprep.subr.mxu0 0.0
    %465 = vmatpush2.msra.mxu0 0.0
    %466 = vmatprep.subr.mxu0 0.0
    %467 = vmatpush2.msra.mxu0 0.0
    %468 = vmatprep.subr.mxu0 0.0
    %469 = vmatpush2.msra.mxu0 0.0
    %470 = vmatprep.subr.mxu0 0.0
    %471 = vmatpush2.msra.mxu0 0.0
    %472 = vmatprep.subr.mxu0 0.0
    %473 = vmatpush2.msra.mxu0 0.0
    %474 = vmatprep.mubr.f32.mxu0 0.0
    %475 = vmatmul.mubr.f32.gmra.mxu0 %v111
    %v476 = vpop.f32.mrf.mxu0
    %v477 = vadd.f32 0.0, %v476
    %v478 = vpop.f32.mrf.mxu0
    %479 = vmatprep.mubr.f32.mxu0 0.0
    %480 = vmatmul.mubr.f32.gmra.mxu0 %v112
    %v481 = vpop.f32.mrf.mxu0
    %v482 = vadd.f32 0.0, %v481
    %v483 = vpop.f32.mrf.mxu0
    %484 = vmatprep.mubr.f32.mxu0 0.0
    %485 = vmatmul.mubr.f32.gmra.mxu0 %v113
    %v486 = vpop.f32.mrf.mxu0
    %v487 = vadd.f32 0.0, %v486
    %v488 = vpop.f32.mrf.mxu0
    %489 = vmatprep.mubr.f32.mxu0 0.0
    %490 = vmatmul.mubr.f32.gmra.mxu0 %v114
    %v491 = vpop.f32.mrf.mxu0
    %v492 = vadd.f32 0.0, %v491
    %v493 = vpop.f32.mrf.mxu0
    %494 = vdwg.mxu0
    %v495 = vadd.f32 %v406, %v477
    %v496 = vadd.f32 %v407, %v482
    %v497 = vadd.f32 %v408, %v487
    %v498 = vadd.f32 %v409, %v492
    %499 = vst [vmem:[#allocation8] sm:$0xff] %v495
    %500 = vst [vmem:[#allocation8 + $0x8] sm:$0xff] %v496
    %501 = vst [vmem:[#allocation8 + $0x10] sm:$0xff] %v497
    %502 = vst [vmem:[#allocation8 + $0x18] sm:$0xff] %v498
    // Predicated region
    $region30: #{tpu_custom_call.1} parent=1 // pred_check
      _
    $region31: #{tpu_custom_call.1} parent=1 // pred_check_branch
      %504 = sbr.rel (0) target = $region33
    $region32: #{tpu_custom_call.1} parent=1 // pred_region
      %s506 = ssub.s32 512, 512
      %507 = vsyncadd [#allocation4], %s506
      %s508 = sshll.u32 [#allocation8], 4
      %s509 = int_to_ptr.vmem [resolvable:$true] %s508
      %514 = dma.vmem_to_hbm [thread:$0]  %s509, 512, %s3, [#allocation4], 128, 128, 8
    $region33: #{tpu_custom_call.1} parent=1 // pred_fallthru
      _
    // Predicated region
    $region34: #{tpu_custom_call.1} parent=1 // pred_check
      _
    $region35: #{tpu_custom_call.1} parent=1 // pred_check_branch
      %516 = sbr.rel (0) target = $region37
    $region36: #{tpu_custom_call.1} parent=1 // pred_region
      %s518 = ssub.s32 512, 512
      %519 = vsyncadd [#allocation10], %s518
      %s520 = sshll.u32 [#allocation9], 4
      %s521 = int_to_ptr.vmem [resolvable:$true] %s520
      %526 = dma.vmem_to_hbm [thread:$0]  %s521, 512, %s4, [#allocation10], 128, 128, 8
    $region37: #{tpu_custom_call.1} parent=1 // pred_fallthru
      _
    // Predicated region
    $region38: #{tpu_custom_call.1} parent=1 // pred_check
      _
    $region39: #{tpu_custom_call.1} parent=1 // pred_check_branch
      %528 = sbr.rel (0) target = $region41
    $region40: #{tpu_custom_call.1} parent=1 // pred_region
      %529 = dma.done [#allocation4], 512
    $region41: #{tpu_custom_call.1} parent=1 // pred_fallthru
      _
    // Predicated region
    $region42: #{tpu_custom_call.1} parent=1 // pred_check
      _
    $region43: #{tpu_custom_call.1} parent=1 // pred_check_branch
      %531 = sbr.rel (0) target = $region45
    $region44: #{tpu_custom_call.1} parent=1 // pred_region
      %532 = dma.done [#allocation10], 512
    $region45: #{tpu_custom_call.1} parent=1 // pred_fallthru
      _
    %533 = vsyncpa [#allocation3], 1
    %534 = vsyncpa [#allocation6], 1
    %535 = vsyncpa [#allocation4], 1
    %536 = vsyncpa [#allocation10], 1

</llo_original>
